<compile_context>
chip_gen: v6e
topology: v6e:2x2x1
jax: 0.10.0
libtpu: 0.0.40
codegen_flags: <defaults>
</compile_context>

<pallas_src>
import jax
import jax.numpy as jnp
import numpy as np
from jax.experimental import pallas as pl
from jax.experimental.pallas import tpu as pltpu


def spectral_block_kernel(x_ref, wl_ref, bf_ref, wr_ref, wi_ref, binv_ref,
                          gamma_ref, beta_ref, o_ref):
    """Single grid point; every operand fits comfortably in VMEM at these sizes."""
    B, Cin, L = x_ref.shape
    Cout = wl_ref.shape[0]
    M2 = bf_ref.shape[1]          # 2 * Mp  (modes zero-padded to a sublane multiple)
    Mp = M2 // 2

    x3 = x_ref[...]                                            # (B, Cin, L)

    # ---- nn.Conv1d(k=1, bias=False): one batched MXU matmul over B ----------
    wl_b = jnp.broadcast_to(wl_ref[...][None], (B, Cout, Cin))
    x2 = jnp.einsum('boi,bil->bol', wl_b, x3,
                    preferred_element_type=jnp.float32)        # (B, Cout, L)

    # ---- truncated rFFT: ONE fused [cos | -sin] matmul for the whole batch --
    xf = jnp.dot(x3.reshape(B * Cin, L), bf_ref[...],
                 preferred_element_type=jnp.float32)           # (B*Cin, 2*Mp)
    xr = xf[:, :Mp].reshape(B, Cin, Mp)                        # Re(X_m)
    xi = xf[:, Mp:].reshape(B, Cin, Mp)                        # Im(X_m)

    # ---- per-mode complex channel mixing: einsum('bim,iom->bom') ------------
    # (kept as a small broadcast-multiply-reduce here; at production FNO sizes
    #  fold wr/wi into a block-diagonal (Cin*2Mp, Cout*2Mp) weight -> one MXU matmul)
    wr = wr_ref[...][None]                                     # (1, Cin, Cout, Mp)
    wi = wi_ref[...][None]
    xr4 = xr[:, :, None, :]                                    # (B, Cin, 1, Mp)
    xi4 = xi[:, :, None, :]
    o_r = jnp.sum(xr4 * wr - xi4 * wi, axis=1)                 # (B, Cout, Mp)
    o_i = jnp.sum(xr4 * wi + xi4 * wr, axis=1)                 # (B, Cout, Mp)

    # ---- truncated irFFT: ONE fused [cos ; -sin] matmul ---------------------
    o_cat = jnp.concatenate([o_r, o_i], axis=-1)               # (B, Cout, 2*Mp)
    x1 = jnp.dot(o_cat.reshape(B * Cout, M2), binv_ref[...],
                 preferred_element_type=jnp.float32)           # (B*Cout, L)

    # ---- residual add + BatchNorm1d (batch stats, biased var) + ReLU --------
    z = x1.reshape(B, Cout, L) + x2                            # stays in registers
    n = float(B * L)
    mu = jnp.sum(jnp.sum(z, axis=2, keepdims=True), axis=0, keepdims=True) / n
    d = z - mu
    var = jnp.sum(jnp.sum(d * d, axis=2, keepdims=True), axis=0, keepdims=True) / n
    scale = gamma_ref[...] * jax.lax.rsqrt(var + 1e-5)         # (1, Cout, 1)
    o_ref[...] = jnp.maximum(d * scale + beta_ref[...], 0.0)   # single lane-dense store


def spectral_block_forward(x, conv_w, spec_wr, spec_wi, gamma, beta, modes):
    B, Cin, L = x.shape
    Cout = conv_w.shape[0]
    M = int(modes)
    Mp = ((M + 7) // 8) * 8       # pad modes to a sublane multiple; padded modes have
                                  # zero spectral weight so the result is exact.
    f32 = jnp.float32

    # Fused forward DFT basis  [cos | -sin] : (L, 2*Mp)
    l = jnp.arange(L, dtype=f32)[:, None]
    m = jnp.arange(Mp, dtype=f32)[None, :]
    ang = 2.0 * jnp.pi * l * m / L                              # (L, Mp)
    bf = jnp.concatenate([jnp.cos(ang), -jnp.sin(ang)], axis=1)

    # Fused inverse DFT basis (with irfft mode weights 1/2 and 1/L) : (2*Mp, L)
    midx = jnp.arange(Mp)
    wgt = jnp.where((midx == 0) | ((L % 2 == 0) & (midx == L // 2)), 1.0, 2.0).astype(f32)
    angT = ang.T
    binv = jnp.concatenate([(wgt[:, None] / L) * jnp.cos(angT),
                            -(wgt[:, None] / L) * jnp.sin(angT)], axis=0)

    # Zero-padded spectral weights (Cin, Cout, Mp)
    wr = jnp.zeros((Cin, Cout, Mp), f32).at[:, :, :M].set(spec_wr.astype(f32))
    wi = jnp.zeros((Cin, Cout, Mp), f32).at[:, :, :M].set(spec_wi.astype(f32))

    gamma3 = gamma.reshape(1, Cout, 1).astype(f32)
    beta3 = beta.reshape(1, Cout, 1).astype(f32)

    vmem = lambda: pl.BlockSpec(memory_space=pltpu.MemorySpace.VMEM)
    # Single grid point: at these shapes everything fits in VMEM.  At production sizes:
    # grid over B with dimension_semantics=("parallel",) and a two-pass BatchNorm reduction.
    return pl.pallas_call(
        spectral_block_kernel,
        out_shape=jax.ShapeDtypeStruct((B, Cout, L), f32),
        in_specs=[vmem() for _ in range(8)],
        out_specs=vmem(),
    )(x.astype(f32), conv_w.astype(f32), bf, wr, wi, binv, gamma3, beta3)


def spectral_block_reference(x, conv_w, spec_wr, spec_wi, gamma, beta, modes):
    """Pure-JAX reference mirroring the PyTorch module (uses real FFTs)."""
    B, Cin, L = x.shape
    Cout = conv_w.shape[0]
    x2 = jnp.einsum('oi,bil->bol', conv_w, x)
    xft = jnp.fft.rfft(x, axis=-1)
    W = spec_wr + 1j * spec_wi
    out_ft = jnp.zeros((B, Cout, L // 2 + 1), dtype=jnp.complex64)
    out_ft = out_ft.at[:, :, :modes].set(
        jnp.einsum('bix,iox->box', xft[:, :, :modes], W))
    x1 = jnp.fft.irfft(out_ft, n=L, axis=-1)
    z = x1 + x2
    mu = z.mean(axis=(0, 2), keepdims=True)
    var = ((z - mu) ** 2).mean(axis=(0, 2), keepdims=True)
    y = gamma[None, :, None] * (z - mu) / jnp.sqrt(var + 1e-5) + beta[None, :, None]
    return jnp.maximum(y, 0.0)


if __name__ == "__main__":
    B, Cin, Cout, L, MODES = 2, 4, 4, 16, 5

    key = jax.random.PRNGKey(0)
    kx, kw, kr, ki = jax.random.split(key, 4)

    x = jax.random.normal(kx, (B, Cin, L), dtype=jnp.float32)
    # nn.Conv1d(Cin, Cout, kernel_size=1, bias=False) weight -> (Cout, Cin)
    conv_w = jax.random.normal(kw, (Cout, Cin), dtype=jnp.float32) * 0.5
    # SpectralConv1d weights: scale * rand(Cin, Cout, modes, cfloat)
    scale = 1.0 / (Cin * Cout)
    spec_wr = scale * jax.random.uniform(kr, (Cin, Cout, MODES), dtype=jnp.float32)
    spec_wi = scale * jax.random.uniform(ki, (Cin, Cout, MODES), dtype=jnp.float32)
    # nn.BatchNorm1d defaults (freshly constructed: gamma=1, beta=0, batch stats)
    gamma = jnp.ones((Cout,), dtype=jnp.float32)
    beta = jnp.zeros((Cout,), dtype=jnp.float32)

    out = spectral_block_forward(x, conv_w, spec_wr, spec_wi, gamma, beta, MODES)
    out = jax.block_until_ready(out)

    ref = spectral_block_reference(x, conv_w, spec_wr, spec_wi, gamma, beta, MODES)
    ref = jax.block_until_ready(ref)

    np.testing.assert_allclose(np.asarray(out), np.asarray(ref), rtol=1e-3, atol=1e-4)
    print("KERNEL_OK")
</pallas_src>

<mosaic_0001>
module attributes {stable_mosaic.version = 11 : i64} {
  func.func @spectral_block_kernel(%arg0: memref<2x4x16xf32, #tpu.memory_space<vmem>>, %arg1: memref<4x4xf32, #tpu.memory_space<vmem>>, %arg2: memref<16x16xf32, #tpu.memory_space<vmem>>, %arg3: memref<4x4x8xf32, #tpu.memory_space<vmem>>, %arg4: memref<4x4x8xf32, #tpu.memory_space<vmem>>, %arg5: memref<16x16xf32, #tpu.memory_space<vmem>>, %arg6: memref<1x4x1xf32, #tpu.memory_space<vmem>>, %arg7: memref<1x4x1xf32, #tpu.memory_space<vmem>>, %arg8: memref<2x4x16xf32, #tpu.memory_space<vmem>>) attributes {dimension_semantics = [], scalar_prefetch = 0 : i64, scratch_operands = 0 : i64, tpu.core_type = #tpu.core_type<tc>} {
    %c0 = arith.constant 0 : index
    %c0_0 = arith.constant 0 : index
    %c0_1 = arith.constant 0 : index
    %0 = vector.load %arg0[%c0, %c0_0, %c0_1] : memref<2x4x16xf32, #tpu.memory_space<vmem>>, vector<2x4x16xf32>
    %c0_2 = arith.constant 0 : index
    %c0_3 = arith.constant 0 : index
    %1 = vector.load %arg1[%c0_2, %c0_3] : memref<4x4xf32, #tpu.memory_space<vmem>>, vector<4x4xf32>
    %2 = vector.shape_cast %1 : vector<4x4xf32> to vector<1x4x4xf32>
    %3 = vector.shape_cast %2 : vector<1x4x4xf32> to vector<1x4x4xf32>
    %4 = vector.broadcast %3 : vector<1x4x4xf32> to vector<2x4x4xf32>
    "tpu.trace_start"() <{level = 10 : i32, message = "boi,bil->bol"}> : () -> ()
    %cst = arith.constant dense<0.000000e+00> : vector<2x4x16xf32>
    %5 = tpu.matmul %4, %0, %cst {dimension_numbers = #tpu.dot_dimension_numbers<[2], [1], [1], [2], [0, 0, 0, 1, 1, 2], [0], [0]>} : vector<2x4x4xf32>, vector<2x4x16xf32>, vector<2x4x16xf32> -> vector<2x4x16xf32>
    "tpu.trace_stop"() : () -> ()
    %6 = vector.shape_cast %0 : vector<2x4x16xf32> to vector<8x16xf32>
    %c0_4 = arith.constant 0 : index
    %c0_5 = arith.constant 0 : index
    %7 = vector.load %arg2[%c0_4, %c0_5] : memref<16x16xf32, #tpu.memory_space<vmem>>, vector<16x16xf32>
    %cst_6 = arith.constant dense<0.000000e+00> : vector<8x16xf32>
    %8 = tpu.matmul %6, %7, %cst_6 {dimension_numbers = #tpu.dot_dimension_numbers<[1], [0], [0], [1], [0, 0, 1, 1], [], []>} : vector<8x16xf32>, vector<16x16xf32>, vector<8x16xf32> -> vector<8x16xf32>
    %9 = vector.extract_strided_slice %8 {offsets = [0, 0], sizes = [8, 8], strides = [1, 1]} : vector<8x16xf32> to vector<8x8xf32>
    %10 = vector.shape_cast %9 : vector<8x8xf32> to vector<2x4x8xf32>
    %11 = vector.extract_strided_slice %8 {offsets = [0, 8], sizes = [8, 8], strides = [1, 1]} : vector<8x16xf32> to vector<8x8xf32>
    %12 = vector.shape_cast %11 : vector<8x8xf32> to vector<2x4x8xf32>
    %c0_7 = arith.constant 0 : index
    %c0_8 = arith.constant 0 : index
    %c0_9 = arith.constant 0 : index
    %13 = vector.load %arg3[%c0_7, %c0_8, %c0_9] : memref<4x4x8xf32, #tpu.memory_space<vmem>>, vector<4x4x8xf32>
    %14 = vector.shape_cast %13 : vector<4x4x8xf32> to vector<1x4x4x8xf32>
    %c0_10 = arith.constant 0 : index
    %c0_11 = arith.constant 0 : index
    %c0_12 = arith.constant 0 : index
    %15 = vector.load %arg4[%c0_10, %c0_11, %c0_12] : memref<4x4x8xf32, #tpu.memory_space<vmem>>, vector<4x4x8xf32>
    %16 = vector.shape_cast %15 : vector<4x4x8xf32> to vector<1x4x4x8xf32>
    %17 = vector.shape_cast %10 : vector<2x4x8xf32> to vector<2x4x1x8xf32>
    %18 = vector.shape_cast %12 : vector<2x4x8xf32> to vector<2x4x1x8xf32>
    %19 = vector.broadcast %17 : vector<2x4x1x8xf32> to vector<2x4x4x8xf32>
    %20 = vector.broadcast %14 : vector<1x4x4x8xf32> to vector<2x4x4x8xf32>
    %21 = arith.mulf %19, %20 : vector<2x4x4x8xf32>
    %22 = vector.broadcast %18 : vector<2x4x1x8xf32> to vector<2x4x4x8xf32>
    %23 = vector.broadcast %16 : vector<1x4x4x8xf32> to vector<2x4x4x8xf32>
    %24 = arith.mulf %22, %23 : vector<2x4x4x8xf32>
    %25 = arith.subf %21, %24 : vector<2x4x4x8xf32>
    %cst_13 = arith.constant dense<0.000000e+00> : vector<2x4x8xf32>
    %26 = vector.multi_reduction <add>, %25, %cst_13 [1] : vector<2x4x4x8xf32> to vector<2x4x8xf32>
    %27 = vector.broadcast %17 : vector<2x4x1x8xf32> to vector<2x4x4x8xf32>
    %28 = vector.broadcast %16 : vector<1x4x4x8xf32> to vector<2x4x4x8xf32>
    %29 = arith.mulf %27, %28 : vector<2x4x4x8xf32>
    %30 = vector.broadcast %18 : vector<2x4x1x8xf32> to vector<2x4x4x8xf32>
    %31 = vector.broadcast %14 : vector<1x4x4x8xf32> to vector<2x4x4x8xf32>
    %32 = arith.mulf %30, %31 : vector<2x4x4x8xf32>
    %33 = arith.addf %29, %32 : vector<2x4x4x8xf32>
    %cst_14 = arith.constant dense<0.000000e+00> : vector<2x4x8xf32>
    %34 = vector.multi_reduction <add>, %33, %cst_14 [1] : vector<2x4x4x8xf32> to vector<2x4x8xf32>
    %35 = tpu.concatenate %26, %34 in 2 : vector<2x4x8xf32>, vector<2x4x8xf32> -> vector<2x4x16xf32>
    %36 = vector.shape_cast %35 : vector<2x4x16xf32> to vector<8x16xf32>
    %c0_15 = arith.constant 0 : index
    %c0_16 = arith.constant 0 : index
    %37 = vector.load %arg5[%c0_15, %c0_16] : memref<16x16xf32, #tpu.memory_space<vmem>>, vector<16x16xf32>
    %cst_17 = arith.constant dense<0.000000e+00> : vector<8x16xf32>
    %38 = tpu.matmul %36, %37, %cst_17 {dimension_numbers = #tpu.dot_dimension_numbers<[1], [0], [0], [1], [0, 0, 1, 1], [], []>} : vector<8x16xf32>, vector<16x16xf32>, vector<8x16xf32> -> vector<8x16xf32>
    %39 = vector.shape_cast %38 : vector<8x16xf32> to vector<2x4x16xf32>
    %40 = arith.addf %39, %5 : vector<2x4x16xf32>
    %cst_18 = arith.constant dense<0.000000e+00> : vector<2x4xf32>
    %41 = vector.multi_reduction <add>, %40, %cst_18 [2] : vector<2x4x16xf32> to vector<2x4xf32>
    %42 = vector.shape_cast %41 : vector<2x4xf32> to vector<2x4x1xf32>
    %cst_19 = arith.constant dense<0.000000e+00> : vector<4x1xf32>
    %43 = vector.multi_reduction <add>, %42, %cst_19 [0] : vector<2x4x1xf32> to vector<4x1xf32>
    %44 = vector.shape_cast %43 : vector<4x1xf32> to vector<1x4x1xf32>
    %cst_20 = arith.constant 3.200000e+01 : f32
    %45 = vector.broadcast %cst_20 : f32 to vector<1x4x1xf32>
    %46 = arith.divf %44, %45 : vector<1x4x1xf32>
    %47 = vector.broadcast %46 : vector<1x4x1xf32> to vector<2x4x16xf32>
    %48 = arith.subf %40, %47 : vector<2x4x16xf32>
    %49 = arith.mulf %48, %48 : vector<2x4x16xf32>
    %cst_21 = arith.constant dense<0.000000e+00> : vector<2x4xf32>
    %50 = vector.multi_reduction <add>, %49, %cst_21 [2] : vector<2x4x16xf32> to vector<2x4xf32>
    %51 = vector.shape_cast %50 : vector<2x4xf32> to vector<2x4x1xf32>
    %cst_22 = arith.constant dense<0.000000e+00> : vector<4x1xf32>
    %52 = vector.multi_reduction <add>, %51, %cst_22 [0] : vector<2x4x1xf32> to vector<4x1xf32>
    %53 = vector.shape_cast %52 : vector<4x1xf32> to vector<1x4x1xf32>
    %cst_23 = arith.constant 3.200000e+01 : f32
    %54 = vector.broadcast %cst_23 : f32 to vector<1x4x1xf32>
    %55 = arith.divf %53, %54 : vector<1x4x1xf32>
    %c0_24 = arith.constant 0 : index
    %c0_25 = arith.constant 0 : index
    %c0_26 = arith.constant 0 : index
    %56 = vector.load %arg6[%c0_24, %c0_25, %c0_26] : memref<1x4x1xf32, #tpu.memory_space<vmem>>, vector<1x4x1xf32>
    %cst_27 = arith.constant 9.99999974E-6 : f32
    %57 = vector.broadcast %cst_27 : f32 to vector<1x4x1xf32>
    %58 = arith.addf %55, %57 : vector<1x4x1xf32>
    %59 = math.rsqrt %58 : vector<1x4x1xf32>
    %60 = arith.mulf %56, %59 : vector<1x4x1xf32>
    %61 = vector.broadcast %60 : vector<1x4x1xf32> to vector<2x4x16xf32>
    %62 = arith.mulf %48, %61 : vector<2x4x16xf32>
    %c0_28 = arith.constant 0 : index
    %c0_29 = arith.constant 0 : index
    %c0_30 = arith.constant 0 : index
    %63 = vector.load %arg7[%c0_28, %c0_29, %c0_30] : memref<1x4x1xf32, #tpu.memory_space<vmem>>, vector<1x4x1xf32>
    %64 = vector.broadcast %63 : vector<1x4x1xf32> to vector<2x4x16xf32>
    %65 = arith.addf %62, %64 : vector<2x4x16xf32>
    %cst_31 = arith.constant 0.000000e+00 : f32
    %66 = vector.broadcast %cst_31 : f32 to vector<2x4x16xf32>
    %67 = arith.maximumf %65, %66 : vector<2x4x16xf32>
    %c0_32 = arith.constant 0 : index
    %c0_33 = arith.constant 0 : index
    %c0_34 = arith.constant 0 : index
    %68 = vector.load %arg8[%c0_32, %c0_33, %c0_34] : memref<2x4x16xf32, #tpu.memory_space<vmem>>, vector<2x4x16xf32>
    tpu.vector_store %arg8[%c0_32, %c0_33, %c0_34], %67 {strides = array<i32>} : memref<2x4x16xf32, #tpu.memory_space<vmem>>, vector<2x4x16xf32>,
    return
  }
}

</mosaic_0001>

<llo_original>
// kernel: tpu_custom_call.1
$region0: #{tpu_custom_call.1}
  #allocation0 [shape = 'u32[]', space=smem, size = 0x4, offset = 0x4, fixed_abs, tag = 'smem constant byte address 0x4 - core index']
  #allocation1 [shape = 'u32[144,128]{1,0:T(1,128)}', space=vmem, size = 0x12000, scoped, tag = 'internal scratch']
  %s0 = inlined_call_operand.hbm [shape: f32[2,4,16], index: 0, kind: input, shape index: {}]
  %s1 = inlined_call_operand.hbm [shape: f32[4,4], index: 1, kind: input, shape index: {}]
  %s2 = inlined_call_operand.hbm [shape: f32[16,16], index: 2, kind: input, shape index: {}]
  %s3 = inlined_call_operand.hbm [shape: f32[4,4,8], index: 3, kind: input, shape index: {}]
  %s4 = inlined_call_operand.vmem [shape: f32[4,4,8], index: 4, kind: input, shape index: {}]
  %s5 = inlined_call_operand.hbm [shape: f32[16,16], index: 5, kind: input, shape index: {}]
  %s6 = inlined_call_operand.vmem [shape: f32[1,4,1], index: 6, kind: input, shape index: {}]
  %s7 = inlined_call_operand.vmem [shape: f32[1,4,1], index: 7, kind: input, shape index: {}]
  %s8 = inlined_call_operand.hbm [shape: f32[2,4,16], index: 8, kind: output, shape index: {}]
  %s9 = sld [smem:[#allocation0]]
  $region62: #{tpu_custom_call.1} parent=0
    _
  %s11 = ssub.s32 1, %s9
  %s12 = scalar_select 0, %s11, %s9
  $region1: #{tpu_custom_call.1} parent=0
    #allocation2 [shape = 'u8[4096]{0}', space=vmem, size = 0x1000, scoped, tag = 'input window, operand 0, single buffered']
    #allocation3 [shape = 's32[1]{0}', space=sflag, size = 0x4, scoped, tag = 'scoped memory for tpu_custom_call.1']
    #allocation4 [shape = 's32[1]{0}', space=sflag, size = 0x4, scoped, tag = 'scoped memory for tpu_custom_call.1']
    #allocation5 [shape = 'u8[2048]{0}', space=vmem, size = 0x800, scoped, tag = 'input window, operand 1, single buffered']
    #allocation6 [shape = 's32[1]{0}', space=sflag, size = 0x4, scoped, tag = 'scoped memory for tpu_custom_call.1']
    #allocation7 [shape = 'u8[8192]{0}', space=vmem, size = 0x2000, scoped, tag = 'input window, operand 2, single buffered']
    #allocation8 [shape = 'u8[8192]{0}', space=vmem, size = 0x2000, scoped, tag = 'input window, operand 3, single buffered']
    #allocation9 [shape = 's32[1]{0}', space=sflag, size = 0x4, scoped, tag = 'scoped memory for tpu_custom_call.1']
    #allocation10 [shape = 'u8[8192]{0}', space=vmem, size = 0x2000, scoped, tag = 'input window, operand 5, single buffered']
    #allocation11 [shape = 'u8[4096]{0}', space=vmem, size = 0x1000, scoped, tag = 'output window, operand 0, single buffered']
    %13 = vsyncpa [#allocation3], 0
    %14 = vsyncpa [#allocation6], 0
    %15 = vsyncpa [#allocation9], 0
    %16 = vsyncpa [#allocation4], 0
    // Predicated region
    $region2: #{tpu_custom_call.1} parent=1 // pred_check
      _
    $region3: #{tpu_custom_call.1} parent=1 // pred_check_branch
      %18 = sbr.rel (0) target = $region5
    $region4: #{tpu_custom_call.1} parent=1 // pred_region
      %s20 = ssub.s32 128, 128
      %21 = vsyncadd [#allocation3], %s20
      %s22 = sshll.u32 [#allocation2], 4
      %s23 = int_to_ptr.vmem [resolvable:$true] %s22
      %28 = dma.hbm_to_vmem [thread:$0]  %s0, 128, %s23, [#allocation3], 64, 64, 4
    $region5: #{tpu_custom_call.1} parent=1 // pred_fallthru
      _
    // Predicated region
    $region6: #{tpu_custom_call.1} parent=1 // pred_check
      _
    $region7: #{tpu_custom_call.1} parent=1 // pred_check_branch
      %30 = sbr.rel (0) target = $region9
    $region8: #{tpu_custom_call.1} parent=1 // pred_region
      %s32 = ssub.s32 64, 64
      %33 = vsyncadd [#allocation6], %s32
      %s35 = sshll.u32 [#allocation5], 4
      %s36 = int_to_ptr.vmem [resolvable:$true] %s35
      %38 = dma.hbm_to_vmem [thread:$0]  %s1, 64, %s36, [#allocation6]
    $region9: #{tpu_custom_call.1} parent=1 // pred_fallthru
      _
    // Predicated region
    $region10: #{tpu_custom_call.1} parent=1 // pred_check
      _
    $region11: #{tpu_custom_call.1} parent=1 // pred_check_branch
      %40 = sbr.rel (0) target = $region13
    $region12: #{tpu_custom_call.1} parent=1 // pred_region
      %s42 = ssub.s32 256, 256
      %43 = vsyncadd [#allocation6], %s42
      %s44 = sshll.u32 [#allocation7], 4
      %s45 = int_to_ptr.vmem [resolvable:$true] %s44
      %50 = dma.hbm_to_vmem [thread:$0]  %s2, 256, %s45, [#allocation6], 128, 128, 8
    $region13: #{tpu_custom_call.1} parent=1 // pred_fallthru
      _
    // Predicated region
    $region14: #{tpu_custom_call.1} parent=1 // pred_check
      _
    $region15: #{tpu_custom_call.1} parent=1 // pred_check_branch
      %52 = sbr.rel (0) target = $region17
    $region16: #{tpu_custom_call.1} parent=1 // pred_region
      %s54 = ssub.s32 256, 256
      %55 = vsyncadd [#allocation9], %s54
      %s56 = sshll.u32 [#allocation8], 4
      %s57 = int_to_ptr.vmem [resolvable:$true] %s56
      %62 = dma.hbm_to_vmem [thread:$0]  %s3, 256, %s57, [#allocation9], 64, 64, 4
    $region17: #{tpu_custom_call.1} parent=1 // pred_fallthru
      _
    // Predicated region
    $region18: #{tpu_custom_call.1} parent=1 // pred_check
      _
    $region19: #{tpu_custom_call.1} parent=1 // pred_check_branch
      %64 = sbr.rel (0) target = $region21
    $region20: #{tpu_custom_call.1} parent=1 // pred_region
      _
    $region21: #{tpu_custom_call.1} parent=1 // pred_fallthru
      _
    // Predicated region
    $region22: #{tpu_custom_call.1} parent=1 // pred_check
      _
    $region23: #{tpu_custom_call.1} parent=1 // pred_check_branch
      %66 = sbr.rel (0) target = $region25
    $region24: #{tpu_custom_call.1} parent=1 // pred_region
      %s68 = ssub.s32 256, 256
      %69 = vsyncadd [#allocation9], %s68
      %s70 = sshll.u32 [#allocation10], 4
      %s71 = int_to_ptr.vmem [resolvable:$true] %s70
      %76 = dma.hbm_to_vmem [thread:$0]  %s5, 256, %s71, [#allocation9], 128, 128, 8
    $region25: #{tpu_custom_call.1} parent=1 // pred_fallthru
      _
    // Predicated region
    $region26: #{tpu_custom_call.1} parent=1 // pred_check
      _
    $region27: #{tpu_custom_call.1} parent=1 // pred_check_branch
      %78 = sbr.rel (0) target = $region29
    $region28: #{tpu_custom_call.1} parent=1 // pred_region
      _
    $region29: #{tpu_custom_call.1} parent=1 // pred_fallthru
      _
    // Predicated region
    $region30: #{tpu_custom_call.1} parent=1 // pred_check
      _
    $region31: #{tpu_custom_call.1} parent=1 // pred_check_branch
      %80 = sbr.rel (0) target = $region33
    $region32: #{tpu_custom_call.1} parent=1 // pred_region
      _
    $region33: #{tpu_custom_call.1} parent=1 // pred_fallthru
      _
    // Predicated region
    $region34: #{tpu_custom_call.1} parent=1 // pred_check
      _
    $region35: #{tpu_custom_call.1} parent=1 // pred_check_branch
      %82 = sbr.rel (0) target = $region37
    $region36: #{tpu_custom_call.1} parent=1 // pred_region
      %83 = dma.done [#allocation3], 128
    $region37: #{tpu_custom_call.1} parent=1 // pred_fallthru
      _
    // Predicated region
    $region38: #{tpu_custom_call.1} parent=1 // pred_check
      _
    $region39: #{tpu_custom_call.1} parent=1 // pred_check_branch
      %85 = sbr.rel (0) target = $region41
    $region40: #{tpu_custom_call.1} parent=1 // pred_region
      %86 = dma.done [#allocation6], 64
    $region41: #{tpu_custom_call.1} parent=1 // pred_fallthru
      _
    // Predicated region
    $region42: #{tpu_custom_call.1} parent=1 // pred_check
      _
    $region43: #{tpu_custom_call.1} parent=1 // pred_check_branch
      %88 = sbr.rel (0) target = $region45
    $region44: #{tpu_custom_call.1} parent=1 // pred_region
      %89 = dma.done [#allocation6], 256
    $region45: #{tpu_custom_call.1} parent=1 // pred_fallthru
      _
    // Predicated region
    $region46: #{tpu_custom_call.1} parent=1 // pred_check
      _
    $region47: #{tpu_custom_call.1} parent=1 // pred_check_branch
      %91 = sbr.rel (0) target = $region49
    $region48: #{tpu_custom_call.1} parent=1 // pred_region
      %92 = dma.done [#allocation9], 256
    $region49: #{tpu_custom_call.1} parent=1 // pred_fallthru
      _
    // Predicated region
    $region50: #{tpu_custom_call.1} parent=1 // pred_check
      _
    $region51: #{tpu_custom_call.1} parent=1 // pred_check_branch
      %94 = sbr.rel (0) target = $region53
    $region52: #{tpu_custom_call.1} parent=1 // pred_region
      %95 = dma.done [#allocation9], 256
    $region53: #{tpu_custom_call.1} parent=1 // pred_fallthru
      _
    %v96 = vld [vmem:[#allocation2] sm:$0xf]
    %v97 = vld [vmem:[#allocation2 + $0x4] sm:$0xf]
    %v98 = vld [vmem:[#allocation5] sm:$0xf]
    %vm99 = vcmask 31744
    %v101 = vsel %vm99, %v98, 0
    %vm103 = vcmask 1043456
    %v105 = vsel %vm103, %v96, 0
    %107 = vmatprep.subr.mxu0 0.0
    %108 = vmatpush1.msra.mxu0 0.0
    %109 = vmatprep.subr.mxu0 0.0
    %110 = vmatpush1.msra.mxu0 0.0
    %111 = vmatprep.subr.mxu0 0.0
    %112 = vmatpush1.msra.mxu0 0.0
    %113 = vmatprep.subr.mxu0 0.0
    %114 = vmatpush1.msra.mxu0 0.0
    %115 = vmatprep.subr.mxu0 0.0
    %116 = vmatpush1.msra.mxu0 0.0
    %117 = vmatprep.subr.mxu0 0.0
    %118 = vmatpush1.msra.mxu0 0.0
    %119 = vmatprep.subr.mxu0 0.0
    %120 = vmatpush1.msra.mxu0 0.0
    %121 = vmatprep.subr.mxu0 0.0
    %122 = vmatpush1.msra.mxu0 0.0
    %123 = vmatprep.subr.mxu0 0.0
    %124 = vmatpush1.msra.mxu0 0.0
    %125 = vmatprep.subr.mxu0 0.0
    %126 = vmatpush1.msra.mxu0 0.0
    %127 = vmatprep.subr.mxu0 0.0
    %128 = vmatpush1.msra.mxu0 0.0
    %129 = vmatprep.subr.mxu0 0.0
    %130 = vmatpush1.msra.mxu0 0.0
    %131 = vmatprep.subr.mxu0 0.0
    %132 = vmatpush1.msra.mxu0 0.0
    %133 = vmatprep.subr.mxu0 0.0
    %134 = vmatpush1.msra.mxu0 0.0
    %135 = vmatprep.subr.mxu0 0.0
    %136 = vmatpush1.msra.mxu0 0.0
    %137 = vmatprep.subr.mxu0 0.0
    %138 = vmatpush1.msra.mxu0 %v105
    %139 = vmatprep.subr.mxu0 0.0
    %140 = vmatpush2.msra.mxu0 0.0
    %141 = vmatprep.subr.mxu0 0.0
    %142 = vmatpush2.msra.mxu0 0.0
    %143 = vmatprep.subr.mxu0 0.0
    %144 = vmatpush2.msra.mxu0 0.0
    %145 = vmatprep.subr.mxu0 0.0
    %146 = vmatpush2.msra.mxu0 0.0
    %147 = vmatprep.subr.mxu0 0.0
    %148 = vmatpush2.msra.mxu0 0.0
    %149 = vmatprep.subr.mxu0 0.0
    %150 = vmatpush2.msra.mxu0 0.0
    %151 = vmatprep.subr.mxu0 0.0
    %152 = vmatpush2.msra.mxu0 0.0
    %153 = vmatprep.subr.mxu0 0.0
    %154 = vmatpush2.msra.mxu0 0.0
    %155 = vmatprep.subr.mxu0 0.0
    %156 = vmatpush2.msra.mxu0 0.0
    %157 = vmatprep.subr.mxu0 0.0
    %158 = vmatpush2.msra.mxu0 0.0
    %159 = vmatprep.subr.mxu0 0.0
    %160 = vmatpush2.msra.mxu0 0.0
    %161 = vmatprep.subr.mxu0 0.0
    %162 = vmatpush2.msra.mxu0 0.0
    %163 = vmatprep.subr.mxu0 0.0
    %164 = vmatpush2.msra.mxu0 0.0
    %165 = vmatprep.subr.mxu0 0.0
    %166 = vmatpush2.msra.mxu0 0.0
    %167 = vmatprep.subr.mxu0 0.0
    %168 = vmatpush2.msra.mxu0 0.0
    %169 = vmatprep.subr.mxu0 0.0
    %170 = vmatpush2.msra.mxu0 0.0
    %171 = vmatprep.mubr.f32.mxu0 0.0
    %172 = vmatmul.mubr.f32.gmra.mxu0 %v101
    %v173 = vpop.f32.mrf.mxu0
    %v174 = vadd.f32 0.0, %v173
    %v175 = vpop.f32.mrf.mxu0
    %176 = vdwg.mxu0
    %v178 = vsel %vm103, %v97, 0
    %180 = vmatprep.subr.mxu0 0.0
    %181 = vmatpush1.msra.mxu0 0.0
    %182 = vmatprep.subr.mxu0 0.0
    %183 = vmatpush1.msra.mxu0 0.0
    %184 = vmatprep.subr.mxu0 0.0
    %185 = vmatpush1.msra.mxu0 0.0
    %186 = vmatprep.subr.mxu0 0.0
    %187 = vmatpush1.msra.mxu0 0.0
    %188 = vmatprep.subr.mxu0 0.0
    %189 = vmatpush1.msra.mxu0 0.0
    %190 = vmatprep.subr.mxu0 0.0
    %191 = vmatpush1.msra.mxu0 0.0
    %192 = vmatprep.subr.mxu0 0.0
    %193 = vmatpush1.msra.mxu0 0.0
    %194 = vmatprep.subr.mxu0 0.0
    %195 = vmatpush1.msra.mxu0 0.0
    %196 = vmatprep.subr.mxu0 0.0
    %197 = vmatpush1.msra.mxu0 0.0
    %198 = vmatprep.subr.mxu0 0.0
    %199 = vmatpush1.msra.mxu0 0.0
    %200 = vmatprep.subr.mxu0 0.0
    %201 = vmatpush1.msra.mxu0 0.0
    %202 = vmatprep.subr.mxu0 0.0
    %203 = vmatpush1.msra.mxu0 0.0
    %204 = vmatprep.subr.mxu0 0.0
    %205 = vmatpush1.msra.mxu0 0.0
    %206 = vmatprep.subr.mxu0 0.0
    %207 = vmatpush1.msra.mxu0 0.0
    %208 = vmatprep.subr.mxu0 0.0
    %209 = vmatpush1.msra.mxu0 0.0
    %210 = vmatprep.subr.mxu0 0.0
    %211 = vmatpush1.msra.mxu0 %v178
    %212 = vmatprep.subr.mxu0 0.0
    %213 = vmatpush2.msra.mxu0 0.0
    %214 = vmatprep.subr.mxu0 0.0
    %215 = vmatpush2.msra.mxu0 0.0
    %216 = vmatprep.subr.mxu0 0.0
    %217 = vmatpush2.msra.mxu0 0.0
    %218 = vmatprep.subr.mxu0 0.0
    %219 = vmatpush2.msra.mxu0 0.0
    %220 = vmatprep.subr.mxu0 0.0
    %221 = vmatpush2.msra.mxu0 0.0
    %222 = vmatprep.subr.mxu0 0.0
    %223 = vmatpush2.msra.mxu0 0.0
    %224 = vmatprep.subr.mxu0 0.0
    %225 = vmatpush2.msra.mxu0 0.0
    %226 = vmatprep.subr.mxu0 0.0
    %227 = vmatpush2.msra.mxu0 0.0
    %228 = vmatprep.subr.mxu0 0.0
    %229 = vmatpush2.msra.mxu0 0.0
    %230 = vmatprep.subr.mxu0 0.0
    %231 = vmatpush2.msra.mxu0 0.0
    %232 = vmatprep.subr.mxu0 0.0
    %233 = vmatpush2.msra.mxu0 0.0
    %234 = vmatprep.subr.mxu0 0.0
    %235 = vmatpush2.msra.mxu0 0.0
    %236 = vmatprep.subr.mxu0 0.0
    %237 = vmatpush2.msra.mxu0 0.0
    %238 = vmatprep.subr.mxu0 0.0
    %239 = vmatpush2.msra.mxu0 0.0
    %240 = vmatprep.subr.mxu0 0.0
    %241 = vmatpush2.msra.mxu0 0.0
    %242 = vmatprep.subr.mxu0 0.0
    %243 = vmatpush2.msra.mxu0 0.0
    %244 = vmatprep.mubr.f32.mxu0 0.0
    %245 = vmatmul.mubr.f32.gmra.mxu0 %v101
    %v246 = vpop.f32.mrf.mxu0
    %v247 = vadd.f32 0.0, %v246
    %v248 = vpop.f32.mrf.mxu0
    %249 = vdwg.mxu0
    %v250 = vld [vmem:[#allocation7] sm:$0xff]
    %v251 = vld [vmem:[#allocation7 + $0x8] sm:$0xff]
    %v252 = vcombine.low %v96, %v97
    %vm253 = vcmask 130048
    %v254 = vsel %vm253, %v252, 0
    %256 = vmatprep.subr.mxu0 0.0
    %257 = vmatpush1.msra.mxu0 0.0
    %258 = vmatprep.subr.mxu0 0.0
    %259 = vmatpush1.msra.mxu0 0.0
    %260 = vmatprep.subr.mxu0 0.0
    %261 = vmatpush1.msra.mxu0 0.0
    %262 = vmatprep.subr.mxu0 0.0
    %263 = vmatpush1.msra.mxu0 0.0
    %264 = vmatprep.subr.mxu0 0.0
    %265 = vmatpush1.msra.mxu0 0.0
    %266 = vmatprep.subr.mxu0 0.0
    %267 = vmatpush1.msra.mxu0 0.0
    %268 = vmatprep.subr.mxu0 0.0
    %269 = vmatpush1.msra.mxu0 0.0
    %270 = vmatprep.subr.mxu0 0.0
    %271 = vmatpush1.msra.mxu0 0.0
    %272 = vmatprep.subr.mxu0 0.0
    %273 = vmatpush1.msra.mxu0 0.0
    %274 = vmatprep.subr.mxu0 0.0
    %275 = vmatpush1.msra.mxu0 0.0
    %276 = vmatprep.subr.mxu0 0.0
    %277 = vmatpush1.msra.mxu0 0.0
    %278 = vmatprep.subr.mxu0 0.0
    %279 = vmatpush1.msra.mxu0 0.0
    %280 = vmatprep.subr.mxu0 0.0
    %281 = vmatpush1.msra.mxu0 0.0
    %282 = vmatprep.subr.mxu0 0.0
    %283 = vmatpush1.msra.mxu0 0.0
    %284 = vmatprep.subr.mxu0 0.0
    %285 = vmatpush1.msra.mxu0 %v251
    %286 = vmatprep.subr.mxu0 0.0
    %287 = vmatpush1.msra.mxu0 %v250
    %288 = vmatprep.subr.mxu0 0.0
    %289 = vmatpush2.msra.mxu0 0.0
    %290 = vmatprep.subr.mxu0 0.0
    %291 = vmatpush2.msra.mxu0 0.0
    %292 = vmatprep.subr.mxu0 0.0
    %293 = vmatpush2.msra.mxu0 0.0
    %294 = vmatprep.subr.mxu0 0.0
    %295 = vmatpush2.msra.mxu0 0.0
    %296 = vmatprep.subr.mxu0 0.0
    %297 = vmatpush2.msra.mxu0 0.0
    %298 = vmatprep.subr.mxu0 0.0
    %299 = vmatpush2.msra.mxu0 0.0
    %300 = vmatprep.subr.mxu0 0.0
    %301 = vmatpush2.msra.mxu0 0.0
    %302 = vmatprep.subr.mxu0 0.0
    %303 = vmatpush2.msra.mxu0 0.0
    %304 = vmatprep.subr.mxu0 0.0
    %305 = vmatpush2.msra.mxu0 0.0
    %306 = vmatprep.subr.mxu0 0.0
    %307 = vmatpush2.msra.mxu0 0.0
    %308 = vmatprep.subr.mxu0 0.0
    %309 = vmatpush2.msra.mxu0 0.0
    %310 = vmatprep.subr.mxu0 0.0
    %311 = vmatpush2.msra.mxu0 0.0
    %312 = vmatprep.subr.mxu0 0.0
    %313 = vmatpush2.msra.mxu0 0.0
    %314 = vmatprep.subr.mxu0 0.0
    %315 = vmatpush2.msra.mxu0 0.0
    %316 = vmatprep.subr.mxu0 0.0
    %317 = vmatpush2.msra.mxu0 0.0
    %318 = vmatprep.subr.mxu0 0.0
    %319 = vmatpush2.msra.mxu0 0.0
    %320 = vmatprep.mubr.f32.mxu0 0.0
    %321 = vmatmul.mubr.f32.gmra.mxu0 %v254
    %v322 = vpop.f32.mrf.mxu0
    %v323 = vadd.f32 0.0, %v322
    %v324 = vpop.f32.mrf.mxu0
    %325 = vdwg.mxu0
    %v326 = vld [vmem:[#allocation8] sm:$0xf]
    %v327 = vld [vmem:[#allocation8 + $0x4] sm:$0xf]
    %v328 = vld [vmem:[#allocation8 + $0x8] sm:$0xf]
    %v329 = vld [vmem:[#allocation8 + $0xc] sm:$0xf]
    %v330 = vld [vmem:[%s4] sm:$0xf]
    %v331 = vld [vmem:[%s4 + $0x4] sm:$0xf]
    %v332 = vld [vmem:[%s4 + $0x8] sm:$0xf]
    %v333 = vld [vmem:[%s4 + $0xc] sm:$0xf]
    %v335 = vcombine.high %v323, %v323
    %v337 = vunpack.c.l.s4 1966171168
    %v338 = vunpack.c.0.s8 %v337
    %v339 = vlaneseq
    %v340 = vshrl.u32 %v339, 7
    %v341 = vsub.s32 %v338, %v340
    %v342 = vrot.slane %v323, %v341
    %v344 = vunpack.c.l.s4 1966171168
    %v345 = vunpack.c.0.s8 %v344
    %v346 = vlaneseq
    %v347 = vshrl.u32 %v346, 7
    %v348 = vsub.s32 %v345, %v347
    %v349 = vrot.slane %v335, %v348
    %v350 = vcombine.high %v342, %v342
    %v351 = vcombine.high %v349, %v349
    %v353 = vunpack.c.l.s4 1966171168
    %v354 = vunpack.c.0.s8 %v353
    %v355 = vlaneseq
    %v356 = vshrl.u32 %v355, 7
    %v357 = vsub.s32 %v354, %v356
    %v358 = vrot.slane %v342, %v357
    %v360 = vunpack.c.l.s4 1966171168
    %v361 = vunpack.c.0.s8 %v360
    %v362 = vlaneseq
    %v363 = vshrl.u32 %v362, 7
    %v364 = vsub.s32 %v361, %v363
    %v365 = vrot.slane %v349, %v364
    %v367 = vunpack.c.l.s4 1966171168
    %v368 = vunpack.c.0.s8 %v367
    %v369 = vlaneseq
    %v370 = vshrl.u32 %v369, 7
    %v371 = vsub.s32 %v368, %v370
    %v372 = vrot.slane %v350, %v371
    %v374 = vunpack.c.l.s4 1966171168
    %v375 = vunpack.c.0.s8 %v374
    %v376 = vlaneseq
    %v377 = vshrl.u32 %v376, 7
    %v378 = vsub.s32 %v375, %v377
    %v379 = vrot.slane %v351, %v378
    %v380 = vcombine.high %v358, %v358
    %v381 = vcombine.high %v365, %v365
    %v382 = vcombine.high %v372, %v372
    %v383 = vcombine.high %v379, %v379
    %v384 = vlaneseq
    %v385 = vshrl.u32 %v384, 7
    %v386 = vsub.s32 0, %v385
    %v387 = vrot.slane %v358, %v386
    %v388 = vlaneseq
    %v389 = vshrl.u32 %v388, 7
    %v390 = vsub.s32 0, %v389
    %v391 = vrot.slane %v372, %v390
    %v392 = vlaneseq
    %v393 = vshrl.u32 %v392, 7
    %v394 = vsub.s32 0, %v393
    %v395 = vrot.slane %v380, %v394
    %v396 = vlaneseq
    %v397 = vshrl.u32 %v396, 7
    %v398 = vsub.s32 0, %v397
    %v399 = vrot.slane %v382, %v398
    %v400 = vlaneseq
    %v401 = vshrl.u32 %v400, 7
    %v402 = vsub.s32 0, %v401
    %v403 = vrot.slane %v365, %v402
    %v404 = vlaneseq
    %v405 = vshrl.u32 %v404, 7
    %v406 = vsub.s32 0, %v405
    %v407 = vrot.slane %v379, %v406
    %v408 = vlaneseq
    %v409 = vshrl.u32 %v408, 7
    %v410 = vsub.s32 0, %v409
    %v411 = vrot.slane %v381, %v410
    %v412 = vlaneseq
    %v413 = vshrl.u32 %v412, 7
    %v414 = vsub.s32 0, %v413
    %v415 = vrot.slane %v383, %v414
    %v424 = vmul.f32 %v387, %v326
    %v425 = vmul.f32 %v391, %v327
    %v426 = vmul.f32 %v395, %v328
    %v427 = vmul.f32 %v399, %v329
    %v428 = vmul.f32 %v403, %v326
    %v429 = vmul.f32 %v407, %v327
    %v430 = vmul.f32 %v411, %v328
    %v431 = vmul.f32 %v415, %v329
    %436 = vrot.lane.b32.xlu0 %v330, 8
    %v437 = vpop.permute.xlu0 %436
    %438 = vrot.lane.b32.xlu0 %v331, 8
    %v439 = vpop.permute.xlu0 %438
    %440 = vrot.lane.b32.xlu0 %v332, 8
    %v441 = vpop.permute.xlu0 %440
    %442 = vrot.lane.b32.xlu0 %v333, 8
    %v443 = vpop.permute.xlu0 %442
    %v448 = vmul.f32 %v387, %v437
    %v449 = vmul.f32 %v391, %v439
    %v450 = vmul.f32 %v395, %v441
    %v451 = vmul.f32 %v399, %v443
    %v452 = vmul.f32 %v403, %v437
    %v453 = vmul.f32 %v407, %v439
    %v454 = vmul.f32 %v411, %v441
    %v455 = vmul.f32 %v415, %v443
    %464 = vrot.lane.b32.xlu0 %v448, 120
    %v465 = vpop.permute.xlu0 %464
    %466 = vrot.lane.b32.xlu0 %v449, 120
    %v467 = vpop.permute.xlu0 %466
    %468 = vrot.lane.b32.xlu0 %v450, 120
    %v469 = vpop.permute.xlu0 %468
    %470 = vrot.lane.b32.xlu0 %v451, 120
    %v471 = vpop.permute.xlu0 %470
    %472 = vrot.lane.b32.xlu0 %v452, 120
    %v473 = vpop.permute.xlu0 %472
    %474 = vrot.lane.b32.xlu0 %v453, 120
    %v475 = vpop.permute.xlu0 %474
    %476 = vrot.lane.b32.xlu0 %v454, 120
    %v477 = vpop.permute.xlu0 %476
    %478 = vrot.lane.b32.xlu0 %v455, 120
    %v479 = vpop.permute.xlu0 %478
    %v488 = vsub.f32 %v424, %v465
    %v489 = vsub.f32 %v425, %v467
    %v490 = vsub.f32 %v426, %v469
    %v491 = vsub.f32 %v427, %v471
    %v492 = vsub.f32 %v428, %v473
    %v493 = vsub.f32 %v429, %v475
    %v494 = vsub.f32 %v430, %v477
    %v495 = vsub.f32 %v431, %v479
    %vm496 = vcmask 60416
    %v497 = vsel %vm496, %v488, 0.0
    %v498 = vsel %vm496, %v489, 0.0
    %v499 = vadd.f32 %v497, %v498
    %v500 = vsel %vm496, %v490, 0.0
    %v501 = vadd.f32 %v499, %v500
    %v502 = vsel %vm496, %v491, 0.0
    %v503 = vadd.f32 %v501, %v502
    %v504 = vsel %vm496, %v492, 0.0
    %v505 = vsel %vm496, %v493, 0.0
    %v506 = vadd.f32 %v504, %v505
    %v507 = vsel %vm496, %v494, 0.0
    %v508 = vadd.f32 %v506, %v507
    %v509 = vsel %vm496, %v495, 0.0
    %v510 = vadd.f32 %v508, %v509
    %v511 = vmul.f32 %v387, %v330
    %v512 = vmul.f32 %v391, %v331
    %v513 = vmul.f32 %v395, %v332
    %v514 = vmul.f32 %v399, %v333
    %v515 = vmul.f32 %v403, %v330
    %v516 = vmul.f32 %v407, %v331
    %v517 = vmul.f32 %v411, %v332
    %v518 = vmul.f32 %v415, %v333
    %523 = vrot.lane.b32.xlu0 %v326, 8
    %v524 = vpop.permute.xlu0 %523
    %525 = vrot.lane.b32.xlu0 %v327, 8
    %v526 = vpop.permute.xlu0 %525
    %527 = vrot.lane.b32.xlu0 %v328, 8
    %v528 = vpop.permute.xlu0 %527
    %529 = vrot.lane.b32.xlu0 %v329, 8
    %v530 = vpop.permute.xlu0 %529
    %v535 = vmul.f32 %v387, %v524
    %v536 = vmul.f32 %v391, %v526
    %v537 = vmul.f32 %v395, %v528
    %v538 = vmul.f32 %v399, %v530
    %v539 = vmul.f32 %v403, %v524
    %v540 = vmul.f32 %v407, %v526
    %v541 = vmul.f32 %v411, %v528
    %v542 = vmul.f32 %v415, %v530
    %551 = vrot.lane.b32.xlu0 %v535, 120
    %v552 = vpop.permute.xlu0 %551
    %553 = vrot.lane.b32.xlu0 %v536, 120
    %v554 = vpop.permute.xlu0 %553
    %555 = vrot.lane.b32.xlu0 %v537, 120
    %v556 = vpop.permute.xlu0 %555
    %557 = vrot.lane.b32.xlu0 %v538, 120
    %v558 = vpop.permute.xlu0 %557
    %559 = vrot.lane.b32.xlu0 %v539, 120
    %v560 = vpop.permute.xlu0 %559
    %561 = vrot.lane.b32.xlu0 %v540, 120
    %v562 = vpop.permute.xlu0 %561
    %563 = vrot.lane.b32.xlu0 %v541, 120
    %v564 = vpop.permute.xlu0 %563
    %565 = vrot.lane.b32.xlu0 %v542, 120
    %v566 = vpop.permute.xlu0 %565
    %v575 = vadd.f32 %v511, %v552
    %v576 = vadd.f32 %v512, %v554
    %v577 = vadd.f32 %v513, %v556
    %v578 = vadd.f32 %v514, %v558
    %v579 = vadd.f32 %v515, %v560
    %v580 = vadd.f32 %v516, %v562
    %v581 = vadd.f32 %v517, %v564
    %v582 = vadd.f32 %v518, %v566
    %v583 = vsel %vm496, %v575, 0.0
    %v584 = vsel %vm496, %v576, 0.0
    %v585 = vadd.f32 %v583, %v584
    %v586 = vsel %vm496, %v577, 0.0
    %v587 = vadd.f32 %v585, %v586
    %v588 = vsel %vm496, %v578, 0.0
    %v589 = vadd.f32 %v587, %v588
    %v590 = vsel %vm496, %v579, 0.0
    %v591 = vsel %vm496, %v580, 0.0
    %v592 = vadd.f32 %v590, %v591
    %v593 = vsel %vm496, %v581, 0.0
    %v594 = vadd.f32 %v592, %v593
    %v595 = vsel %vm496, %v582, 0.0
    %v596 = vadd.f32 %v594, %v595
    %599 = vrot.lane.b32.xlu0 %v589, 8
    %v600 = vpop.permute.xlu0 %599
    %601 = vrot.lane.b32.xlu0 %v596, 8
    %v602 = vpop.permute.xlu0 %601
    %vm605 = vcmask 64512
    %v606 = vsel %vm605, %v503, %v600
    %v607 = vsel %vm605, %v510, %v602
    %v608 = vld [vmem:[#allocation10] sm:$0xff]
    %v609 = vld [vmem:[#allocation10 + $0x8] sm:$0xff]
    %v612 = vcombine.low %v606, %v607
    %v613 = vsel %vm253, %v612, 0
    %615 = vmatprep.subr.mxu0 0.0
    %616 = vmatpush1.msra.mxu0 0.0
    %617 = vmatprep.subr.mxu0 0.0
    %618 = vmatpush1.msra.mxu0 0.0
    %619 = vmatprep.subr.mxu0 0.0
    %620 = vmatpush1.msra.mxu0 0.0
    %621 = vmatprep.subr.mxu0 0.0
    %622 = vmatpush1.msra.mxu0 0.0
    %623 = vmatprep.subr.mxu0 0.0
    %624 = vmatpush1.msra.mxu0 0.0
    %625 = vmatprep.subr.mxu0 0.0
    %626 = vmatpush1.msra.mxu0 0.0
    %627 = vmatprep.subr.mxu0 0.0
    %628 = vmatpush1.msra.mxu0 0.0
    %629 = vmatprep.subr.mxu0 0.0
    %630 = vmatpush1.msra.mxu0 0.0
    %631 = vmatprep.subr.mxu0 0.0
    %632 = vmatpush1.msra.mxu0 0.0
    %633 = vmatprep.subr.mxu0 0.0
    %634 = vmatpush1.msra.mxu0 0.0
    %635 = vmatprep.subr.mxu0 0.0
    %636 = vmatpush1.msra.mxu0 0.0
    %637 = vmatprep.subr.mxu0 0.0
    %638 = vmatpush1.msra.mxu0 0.0
    %639 = vmatprep.subr.mxu0 0.0
    %640 = vmatpush1.msra.mxu0 0.0
    %641 = vmatprep.subr.mxu0 0.0
    %642 = vmatpush1.msra.mxu0 0.0
    %643 = vmatprep.subr.mxu0 0.0
    %644 = vmatpush1.msra.mxu0 %v609
    %645 = vmatprep.subr.mxu0 0.0
    %646 = vmatpush1.msra.mxu0 %v608
    %647 = vmatprep.subr.mxu0 0.0
    %648 = vmatpush2.msra.mxu0 0.0
    %649 = vmatprep.subr.mxu0 0.0
    %650 = vmatpush2.msra.mxu0 0.0
    %651 = vmatprep.subr.mxu0 0.0
    %652 = vmatpush2.msra.mxu0 0.0
    %653 = vmatprep.subr.mxu0 0.0
    %654 = vmatpush2.msra.mxu0 0.0
    %655 = vmatprep.subr.mxu0 0.0
    %656 = vmatpush2.msra.mxu0 0.0
    %657 = vmatprep.subr.mxu0 0.0
    %658 = vmatpush2.msra.mxu0 0.0
    %659 = vmatprep.subr.mxu0 0.0
    %660 = vmatpush2.msra.mxu0 0.0
    %661 = vmatprep.subr.mxu0 0.0
    %662 = vmatpush2.msra.mxu0 0.0
    %663 = vmatprep.subr.mxu0 0.0
    %664 = vmatpush2.msra.mxu0 0.0
    %665 = vmatprep.subr.mxu0 0.0
    %666 = vmatpush2.msra.mxu0 0.0
    %667 = vmatprep.subr.mxu0 0.0
    %668 = vmatpush2.msra.mxu0 0.0
    %669 = vmatprep.subr.mxu0 0.0
    %670 = vmatpush2.msra.mxu0 0.0
    %671 = vmatprep.subr.mxu0 0.0
    %672 = vmatpush2.msra.mxu0 0.0
    %673 = vmatprep.subr.mxu0 0.0
    %674 = vmatpush2.msra.mxu0 0.0
    %675 = vmatprep.subr.mxu0 0.0
    %676 = vmatpush2.msra.mxu0 0.0
    %677 = vmatprep.subr.mxu0 0.0
    %678 = vmatpush2.msra.mxu0 0.0
    %679 = vmatprep.mubr.f32.mxu0 0.0
    %680 = vmatmul.mubr.f32.gmra.mxu0 %v613
    %v681 = vpop.f32.mrf.mxu0
    %v682 = vadd.f32 0.0, %v681
    %v683 = vpop.f32.mrf.mxu0
    %684 = vdwg.mxu0
    %v686 = vcombine.high %v682, %v682
    %v688 = vadd.f32 %v682, %v174
    %v689 = vadd.f32 %v686, %v247
    %vm690 = vcmask 125952
    %v691 = vsel %vm690, %v688, 0.0
    %692 = vadd.xlane.f32.xlu0 %v691
    %v693 = vpop.xlane.xlu0 %692
    %v694 = vsel %vm690, %v689, 0.0
    %695 = vadd.xlane.f32.xlu0 %v694
    %v696 = vpop.xlane.xlu0 %695
    %v697 = vsel %vm103, %v693, 0.0
    %v698 = vsel %vm103, %v696, 0.0
    %v699 = vadd.f32 %v697, %v698
    %v700 = vrcp.pop 32.0
    %v701 = vmul.f32 %v699, %v700
    %v702 = vsub.f32 %v688, %v701
    %v703 = vsub.f32 %v689, %v701
    %v704 = vmul.f32 %v702, %v702
    %v705 = vmul.f32 %v703, %v703
    %v706 = vsel %vm690, %v704, 0.0
    %707 = vadd.xlane.f32.xlu0 %v706
    %v708 = vpop.xlane.xlu0 %707
    %v709 = vsel %vm690, %v705, 0.0
    %710 = vadd.xlane.f32.xlu0 %v709
    %v711 = vpop.xlane.xlu0 %710
    %v712 = vsel %vm103, %v708, 0.0
    %v713 = vsel %vm103, %v711, 0.0
    %v714 = vadd.f32 %v712, %v713
    %v715 = vmul.f32 %v714, %v700
    %v716 = vld [vmem:[%s6] sm:$0xf]
    %v717 = vadd.f32 %v715, 1e-05
    %v718 = vrsqrt.pop %v717
    %v719 = vmul.f32 %v716, %v718
    %721 = vset.pattern.permute.xlu0 0
    %722 = vperm.xlu0 %721, %v719
    %v723 = vpop.permute.xlu0 %722
    %v725 = vmul.f32 %v702, %v723
    %v726 = vmul.f32 %v703, %v723
    %v727 = vld [vmem:[%s7] sm:$0xf]
    %729 = vset.pattern.permute.xlu0 0
    %730 = vperm.xlu0 %729, %v727
    %v731 = vpop.permute.xlu0 %730
    %v733 = vadd.f32 %v725, %v731
    %v734 = vadd.f32 %v726, %v731
    %v735 = vmax.f32 %v733, 0.0
    %v736 = vmax.f32 %v734, 0.0
    %737 = vst.msk [vmem:[#allocation11] sm:$0xf] %vm690, %v735
    %738 = vst.msk [vmem:[#allocation11 + $0x4] sm:$0xf] %vm690, %v736
    // Predicated region
    $region54: #{tpu_custom_call.1} parent=1 // pred_check
      _
    $region55: #{tpu_custom_call.1} parent=1 // pred_check_branch
      %740 = sbr.rel (0) target = $region57
    $region56: #{tpu_custom_call.1} parent=1 // pred_region
      %s742 = ssub.s32 128, 128
      %743 = vsyncadd [#allocation4], %s742
      %s744 = sshll.u32 [#allocation11], 4
      %s745 = int_to_ptr.vmem [resolvable:$true] %s744
      %750 = dma.vmem_to_hbm [thread:$0]  %s745, 128, %s8, [#allocation4], 64, 64, 4
    $region57: #{tpu_custom_call.1} parent=1 // pred_fallthru
      _
    // Predicated region
    $region58: #{tpu_custom_call.1} parent=1 // pred_check
      _
    $region59: #{tpu_custom_call.1} parent=1 // pred_check_branch
      %752 = sbr.rel (0) target = $region61
    $region60: #{tpu_custom_call.1} parent=1 // pred_region
      %753 = dma.done [#allocation4], 128
    $region61: #{tpu_custom_call.1} parent=1 // pred_fallthru
      _
    %754 = vsyncpa [#allocation3], 1
    %755 = vsyncpa [#allocation6], 1
    %756 = vsyncpa [#allocation9], 1
    %757 = vsyncpa [#allocation4], 1

</llo_original>
